<compile_context>
chip_gen: v5e
topology: v5e:2x2
jax: 0.10.0
libtpu: 0.0.40
codegen_flags: <defaults>
</compile_context>

<pallas_src>
import math

import jax
import jax.numpy as jnp
from jax.experimental import pallas as pl
from jax.experimental.pallas import tpu as pltpu


def _add_kernel(x_ref, y_ref, o_ref):
    # Elementwise add on the current VMEM tile (VPU).
    o_ref[...] = x_ref[...] + y_ref[...]


# Lane widths to try (widest first); all multiples of 128.
_LANE_CANDIDATES = (4096, 2048, 1024, 512, 256, 128)

# ~2 MiB per operand block (measured sweet spot for mem-bound streaming).
_TARGET_BLOCK_BYTES = 2 * 1024 * 1024


def _add_2d(xf, yf, tile_rows):
    """Tiled elementwise add on a [rows, lanes] slab (ragged last tile OK)."""
    rows, lanes = xf.shape
    itemsize = jnp.dtype(xf.dtype).itemsize
    block_bytes = tile_rows * lanes * itemsize
    # 3 operands x 2 pipeline buffers x block, doubled for headroom; clamp so we
    # never ask for more than a comfortable fraction of any chip's VMEM.
    vmem_limit = min(48 * 1024 * 1024, max(16 * 1024 * 1024, 12 * block_bytes))

    grid = (pl.cdiv(rows, tile_rows),)
    return pl.pallas_call(
        _add_kernel,
        out_shape=jax.ShapeDtypeStruct((rows, lanes), xf.dtype),
        grid_spec=pltpu.PrefetchScalarGridSpec(
            num_scalar_prefetch=0,
            grid=grid,
            in_specs=[
                pl.BlockSpec((tile_rows, lanes), lambda i: (i, 0)),
                pl.BlockSpec((tile_rows, lanes), lambda i: (i, 0)),
            ],
            out_specs=pl.BlockSpec((tile_rows, lanes), lambda i: (i, 0)),
        ),
        compiler_params=pltpu.CompilerParams(
            dimension_semantics=("parallel",),
            vmem_limit_bytes=vmem_limit,
        ),
    )(xf, yf)


def dummy_forward(x, y):
    """Elementwise add (torch.add semantics: broadcasting + dtype promotion)."""
    x = jnp.asarray(x)
    y = jnp.asarray(y)
    out_shape = jnp.broadcast_shapes(x.shape, y.shape)
    out_dtype = jnp.result_type(x.dtype, y.dtype)

    n = math.prod(out_shape) if out_shape else 1
    if n == 0:
        return jnp.zeros(out_shape, out_dtype)

    # Only materialize broadcast / cast when actually required (both are no-ops
    # in the common same-shape, same-dtype case).
    xb = x if (x.shape == out_shape and x.dtype == out_dtype) \
        else jnp.broadcast_to(x, out_shape).astype(out_dtype)
    yb = y if (y.shape == out_shape and y.dtype == out_dtype) \
        else jnp.broadcast_to(y, out_shape).astype(out_dtype)

    itemsize = jnp.dtype(out_dtype).itemsize

    # 1) Pick the widest lane count that divides n (no padding needed then).
    lanes = 128
    for cand in _LANE_CANDIDATES:
        if n % cand == 0:
            lanes = cand
            break

    rows = pl.cdiv(n, lanes)
    pad = rows * lanes - n  # nonzero only when n % 128 != 0

    # 2) Build the lane-dense slab (pure reshape in the aligned common case).
    xf = xb.reshape(-1)
    yf = yb.reshape(-1)
    if pad:
        xf = jnp.pad(xf, (0, pad))
        yf = jnp.pad(yf, (0, pad))
    xf = xf.reshape(rows, lanes)
    yf = yf.reshape(rows, lanes)

    # 3) Choose tiling.
    slab_bytes = rows * lanes * itemsize
    if slab_bytes <= _TARGET_BLOCK_BYTES:
        # Small input: one whole-array block (full dims are always legal),
        # no grid/pipeline overhead.
        tile_rows = rows
    else:
        # ~2 MiB row-tiles, a multiple of 64 rows (layout-safe for any dtype
        # packing). The last, possibly partial, tile is masked by Pallas, so
        # rows need not divide evenly and no extra padding pass is required.
        tile_rows = max(64, (_TARGET_BLOCK_BYTES // (lanes * itemsize)) // 64 * 64)

    out = _add_2d(xf, yf, tile_rows)

    if pad:
        out = out.reshape(-1)[:n]
    return out.reshape(out_shape)


if __name__ == "__main__":
    key = jax.random.PRNGKey(0)
    kx, ky, ka, kb = jax.random.split(key, 4)

    # Small NCHW-shaped inputs consistent with the module interface.
    x = jax.random.normal(kx, (2, 4, 16, 16), dtype=jnp.float32)
    y = jax.random.normal(ky, (2, 4, 16, 16), dtype=jnp.float32)
    z = dummy_forward(x, y)
    jax.block_until_ready(z)
    assert z.shape == x.shape and z.dtype == x.dtype
    assert jnp.allclose(z, x + y, atol=1e-6), "mismatch vs reference add (aligned case)"

    # Ragged shape exercises the 128-lane padding fallback path.
    a = jax.random.normal(ka, (2, 3, 5, 7), dtype=jnp.float32)
    b = jax.random.normal(kb, (2, 3, 5, 7), dtype=jnp.float32)
    c = dummy_forward(a, b)
    jax.block_until_ready(c)
    assert jnp.allclose(c, a + b, atol=1e-6), "mismatch vs reference add (ragged case)"

    # Broadcast + dtype promotion path (torch.add semantics).
    s = jnp.float32(2.5)
    d = dummy_forward(a, s)
    jax.block_until_ready(d)
    assert jnp.allclose(d, a + s, atol=1e-6), "mismatch vs reference add (broadcast case)"

    print("KERNEL_OK")
</pallas_src>

<mosaic_0001>
module attributes {stable_mosaic.version = 11 : i64} {
  func.func @_add_kernel(%arg0: i32, %arg1: memref<1x2048xf32, #tpu.memory_space<vmem>>, %arg2: memref<1x2048xf32, #tpu.memory_space<vmem>>, %arg3: memref<1x2048xf32, #tpu.memory_space<vmem>>) attributes {dimension_semantics = [#tpu.dimension_semantics<parallel>], iteration_bounds = array<i64: 1>, scalar_prefetch = 0 : i64, scratch_operands = 0 : i64, tpu.core_type = #tpu.core_type<tc>, window_params = [{transform_indices = @transform_0, window_bounds = array<i64: 1, 2048>}, {transform_indices = @transform_1, window_bounds = array<i64: 1, 2048>}, {transform_indices = @transform_2, window_bounds = array<i64: 1, 2048>}]} {
    %c0 = arith.constant 0 : index
    %c0_0 = arith.constant 0 : index
    %0 = vector.load %arg1[%c0, %c0_0] : memref<1x2048xf32, #tpu.memory_space<vmem>>, vector<1x2048xf32>
    %c0_1 = arith.constant 0 : index
    %c0_2 = arith.constant 0 : index
    %1 = vector.load %arg2[%c0_1, %c0_2] : memref<1x2048xf32, #tpu.memory_space<vmem>>, vector<1x2048xf32>
    %2 = arith.addf %0, %1 : vector<1x2048xf32>
    %c0_3 = arith.constant 0 : index
    %c0_4 = arith.constant 0 : index
    %3 = vector.load %arg3[%c0_3, %c0_4] : memref<1x2048xf32, #tpu.memory_space<vmem>>, vector<1x2048xf32>
    tpu.vector_store %arg3[%c0_3, %c0_4], %2 {strides = array<i32>} : memref<1x2048xf32, #tpu.memory_space<vmem>>, vector<1x2048xf32>,
    return
  }
  func.func @transform_0(%arg0: i32) -> (i32, i32) {
    %c0_i32 = arith.constant 0 : i32
    %c0_i32_0 = arith.constant 0 : i32
    return %arg0, %c0_i32 : i32, i32
  }
  func.func @transform_1(%arg0: i32) -> (i32, i32) {
    %c0_i32 = arith.constant 0 : i32
    %c0_i32_0 = arith.constant 0 : i32
    return %arg0, %c0_i32 : i32, i32
  }
  func.func @transform_2(%arg0: i32) -> (i32, i32) {
    %c0_i32 = arith.constant 0 : i32
    %c0_i32_0 = arith.constant 0 : i32
    return %arg0, %c0_i32 : i32, i32
  }
}

</mosaic_0001>

<llo_original>
// kernel: tpu_custom_call.1
$region0: #{tpu_custom_call.1}
  #allocation0 [shape = 'u32[]', space=smem, size = 0x4, offset = 0x4, fixed_abs, tag = 'smem constant byte address 0x4 - core index']
  #allocation1 [shape = 'u32[72,128]{1,0:T(1,128)}', space=vmem, size = 0x9000, scoped, tag = 'internal scratch']
  %s0 = inlined_call_operand.hbm [shape: f32[1,2048], index: 0, kind: input, shape index: {}]
  %s1 = inlined_call_operand.hbm [shape: f32[1,2048], index: 1, kind: input, shape index: {}]
  %s2 = inlined_call_operand.hbm [shape: f32[1,2048], index: 2, kind: output, shape index: {}]
  %s3 = sld [smem:[#allocation0]]
  $region26: #{tpu_custom_call.1} parent=0
    _
  %s5 = ssub.s32 1, %s3
  %s6 = scalar_select 0, %s5, %s3
  $region1: #{tpu_custom_call.1} parent=0
    #allocation2 [shape = 'u8[8192]{0}', space=vmem, size = 0x2000, scoped, tag = 'input window, operand 0, single buffered']
    #allocation3 [shape = 's32[1]{0}', space=sflag, size = 0x4, scoped, tag = 'scoped memory for tpu_custom_call.1']
    #allocation4 [shape = 's32[1]{0}', space=sflag, size = 0x4, scoped, tag = 'scoped memory for tpu_custom_call.1']
    #allocation5 [shape = 'u8[8192]{0}', space=vmem, size = 0x2000, scoped, tag = 'input window, operand 1, single buffered']
    #allocation6 [shape = 's32[1]{0}', space=sflag, size = 0x4, scoped, tag = 'scoped memory for tpu_custom_call.1']
    #allocation7 [shape = 'u8[8192]{0}', space=vmem, size = 0x2000, scoped, tag = 'output window, operand 0, single buffered']
    %7 = vsyncpa [#allocation3], 0
    %8 = vsyncpa [#allocation6], 0
    %9 = vsyncpa [#allocation4], 0
    // Predicated region
    $region2: #{tpu_custom_call.1} parent=1 // pred_check
      _
    $region3: #{tpu_custom_call.1} parent=1 // pred_check_branch
      %11 = sbr.rel (0) target = $region5
    $region4: #{tpu_custom_call.1} parent=1 // pred_region
      %13 = vsyncadd [#allocation3], 0
      %s15 = sshll.u32 %s0, 4
      %s16 = int_to_ptr.hbm [resolvable:$true] %s15
      %s17 = sshll.u32 [#allocation2], 4
      %s18 = int_to_ptr.vmem [resolvable:$true] %s17
      %20 = dma.hbm_to_vmem [thread:$0]  %s16, 256, %s18, [#allocation3]
    $region5: #{tpu_custom_call.1} parent=1 // pred_fallthru
      _
    // Predicated region
    $region6: #{tpu_custom_call.1} parent=1 // pred_check
      _
    $region7: #{tpu_custom_call.1} parent=1 // pred_check_branch
      %22 = sbr.rel (0) target = $region9
    $region8: #{tpu_custom_call.1} parent=1 // pred_region
      %24 = vsyncadd [#allocation6], 0
      %s26 = sshll.u32 %s1, 4
      %s27 = int_to_ptr.hbm [resolvable:$true] %s26
      %s28 = sshll.u32 [#allocation5], 4
      %s29 = int_to_ptr.vmem [resolvable:$true] %s28
      %31 = dma.hbm_to_vmem [thread:$0]  %s27, 256, %s29, [#allocation6]
    $region9: #{tpu_custom_call.1} parent=1 // pred_fallthru
      _
    // Predicated region
    $region10: #{tpu_custom_call.1} parent=1 // pred_check
      _
    $region11: #{tpu_custom_call.1} parent=1 // pred_check_branch
      %33 = sbr.rel (0) target = $region13
    $region12: #{tpu_custom_call.1} parent=1 // pred_region
      %35 = dma.done [#allocation3], 256
    $region13: #{tpu_custom_call.1} parent=1 // pred_fallthru
      _
    // Predicated region
    $region14: #{tpu_custom_call.1} parent=1 // pred_check
      _
    $region15: #{tpu_custom_call.1} parent=1 // pred_check_branch
      %37 = sbr.rel (0) target = $region17
    $region16: #{tpu_custom_call.1} parent=1 // pred_region
      %39 = dma.done [#allocation6], 256
    $region17: #{tpu_custom_call.1} parent=1 // pred_fallthru
      _
    %v40 = vld [vmem:[#allocation2] sm:$0xff]
    %v41 = vld [vmem:[#allocation2 + $0x8] sm:$0xff]
    %v42 = vld [vmem:[#allocation5] sm:$0xff]
    %v43 = vld [vmem:[#allocation5 + $0x8] sm:$0xff]
    %v44 = vadd.f32 %v40, %v42
    %v45 = vadd.f32 %v41, %v43
    %46 = vst [vmem:[#allocation7] sm:$0xff] %v44
    %47 = vst [vmem:[#allocation7 + $0x8] sm:$0xff] %v45
    // Predicated region
    $region18: #{tpu_custom_call.1} parent=1 // pred_check
      _
    $region19: #{tpu_custom_call.1} parent=1 // pred_check_branch
      %49 = sbr.rel (0) target = $region21
    $region20: #{tpu_custom_call.1} parent=1 // pred_region
      %51 = vsyncadd [#allocation4], 0
      %s53 = sshll.u32 [#allocation7], 4
      %s54 = int_to_ptr.vmem [resolvable:$true] %s53
      %s55 = sshll.u32 %s2, 4
      %s56 = int_to_ptr.hbm [resolvable:$true] %s55
      %58 = dma.vmem_to_hbm [thread:$0]  %s54, 256, %s56, [#allocation4]
    $region21: #{tpu_custom_call.1} parent=1 // pred_fallthru
      _
    // Predicated region
    $region22: #{tpu_custom_call.1} parent=1 // pred_check
      _
    $region23: #{tpu_custom_call.1} parent=1 // pred_check_branch
      %60 = sbr.rel (0) target = $region25
    $region24: #{tpu_custom_call.1} parent=1 // pred_region
      %62 = dma.done [#allocation4], 256
    $region25: #{tpu_custom_call.1} parent=1 // pred_fallthru
      _
    %63 = vsyncpa [#allocation3], 1
    %64 = vsyncpa [#allocation6], 1
    %65 = vsyncpa [#allocation4], 1

</llo_original>
